<compile_context>
chip_gen: v5e
topology: v5e:2x2
jax: 0.10.0
libtpu: 0.0.40
codegen_flags: <defaults>
</compile_context>

<pallas_src>
import jax
import jax.numpy as jnp
from jax.experimental import pallas as pl
from jax.experimental.pallas import tpu as pltpu


# ----------------------------------------------------------------------------
# Kernels
# ----------------------------------------------------------------------------
def matvec_kernel(x_ref, w_ref, b_ref, o_ref):
    """Fully-collapsed head: one [TB, D] @ [D, 1] matvec + bias."""
    o_ref[...] = (
        jnp.dot(x_ref[...], w_ref[...], preferred_element_type=jnp.float32)
        + b_ref[...]
    ).astype(o_ref.dtype)


def layered_kernel(x_ref, w1_ref, b1_ref, w2_ref, b2_ref, w345_ref, b345_ref,
                   o_ref):
    """Fidelity fallback: layers 1 and 2 explicit, layers 3-5 pre-folded."""
    h = jnp.dot(x_ref[...], w1_ref[...],
                preferred_element_type=jnp.float32) + b1_ref[...]
    # Dropout(0.2) -> identity at inference
    h = jnp.dot(h, w2_ref[...],
                preferred_element_type=jnp.float32) + b2_ref[...]
    # Dropout(0.2)/Dropout(0.1) -> identity; layers 3-5 folded into w345/b345
    o_ref[...] = (
        jnp.dot(h, w345_ref[...], preferred_element_type=jnp.float32)
        + b345_ref[...]
    ).astype(o_ref.dtype)


# ----------------------------------------------------------------------------
# Wrapper
# ----------------------------------------------------------------------------
def _round_up(x, m):
    return pl.cdiv(x, m) * m


def _fold_affine(params):
    """Fold consecutive affine layers (y = x@W + b) into one (W_eff, b_eff)."""
    (w_eff, b_eff), *rest = params
    for w, b in rest:
        b_eff = b_eff @ w + b
        w_eff = w_eff @ w
    return w_eff, b_eff


def clip_aesthetic_predictor(x, params, *, batch_tile=256, collapse=True):
    """Forward pass of the aesthetic-predictor MLP head.

    x:      [B, input_size] float32 (or bfloat16).
    params: list of 5 (W [in, out], b [1, out]) pairs (PyTorch weight.T, bias).
    """
    B, D = x.shape

    # ---- tile / padding bookkeeping (no hard assert on divisibility) -------
    tile = _round_up(min(batch_tile, B), 8)          # sublane granularity
    padded_B = _round_up(B, tile)
    if padded_B != B:
        x = jnp.pad(x, ((0, padded_B - B), (0, 0)))
    grid = (padded_B // tile,)

    def invariant(shape):
        # Grid-invariant operand: whole-array block, same block every step.
        return pl.BlockSpec(shape, lambda i: (0,) * len(shape))

    x_spec = pl.BlockSpec((tile, D), lambda i: (i, 0))
    o_spec = pl.BlockSpec((tile, 1), lambda i: (i, 0))

    compiler_params = pltpu.CompilerParams(
        dimension_semantics=("parallel",),           # shard batch across TCs
        vmem_limit_bytes=32 * 1024 * 1024,
    )

    if collapse:
        w_eff, b_eff = _fold_affine(params)          # [D, 1], [1, 1]
        operands = (x, w_eff, b_eff)
        in_specs = [x_spec, invariant(w_eff.shape), invariant(b_eff.shape)]
        kernel = matvec_kernel
    else:
        (w1, b1), (w2, b2) = params[0], params[1]
        w345, b345 = _fold_affine(params[2:])        # [128, 1], [1, 1]
        operands = (x, w1, b1, w2, b2, w345, b345)
        in_specs = [x_spec,
                    invariant(w1.shape), invariant(b1.shape),
                    invariant(w2.shape), invariant(b2.shape),
                    invariant(w345.shape), invariant(b345.shape)]
        kernel = layered_kernel

    out = pl.pallas_call(
        kernel,
        out_shape=jax.ShapeDtypeStruct((padded_B, 1), jnp.float32),
        grid_spec=pltpu.PrefetchScalarGridSpec(
            num_scalar_prefetch=0,
            grid=grid,
            in_specs=in_specs,
            out_specs=o_spec,
        ),
        compiler_params=compiler_params,
    )(*operands)
    return out[:B]


# ----------------------------------------------------------------------------
# Parameter init + pure-JAX reference
# ----------------------------------------------------------------------------
def init_params(input_size, key):
    """Synthetic init matching nn.Linear shapes.

    Layer sizes: input_size -> 1024 -> 128 -> 64 -> 16 -> 1.
    Weights stored [in, out] (PyTorch weight.T) so the kernel computes
    x @ W + b == PyTorch's x @ weight.T + bias.
    """
    dims = [input_size, 1024, 128, 64, 16, 1]
    params = []
    for li, (fan_in, fan_out) in enumerate(zip(dims[:-1], dims[1:])):
        kw, kb, key = jax.random.split(jax.random.fold_in(key, li), 3)
        bound = 1.0 / jnp.sqrt(fan_in)
        w = jax.random.uniform(kw, (fan_in, fan_out), jnp.float32, -bound, bound)
        b = jax.random.uniform(kb, (1, fan_out), jnp.float32, -bound, bound)
        params.append((w, b))
    return params


def reference_forward(x, params):
    """Plain-JAX layered reference of the forward pass (dropout = identity)."""
    h = x
    for w, b in params:
        h = h @ w + b
    return h


# ----------------------------------------------------------------------------
if __name__ == "__main__":
    key = jax.random.PRNGKey(0)
    input_size = 32      # small synthetic CLIP-embedding width
    batch = 16

    kx, kp = jax.random.split(key)
    x = jax.random.normal(kx, (batch, input_size), jnp.float32)
    params = init_params(input_size, kp)

    ref = reference_forward(x, params)

    # Collapsed (default, fastest) path.
    out_c = clip_aesthetic_predictor(x, params, batch_tile=256, collapse=True)
    out_c = jax.block_until_ready(out_c)
    assert out_c.shape == (batch, 1), out_c.shape
    assert jnp.allclose(out_c, ref, atol=1e-4, rtol=1e-4), (
        float(jnp.max(jnp.abs(out_c - ref))))

    # Layered fidelity path (layers 3-5 pre-folded).
    out_l = clip_aesthetic_predictor(x, params, batch_tile=256, collapse=False)
    out_l = jax.block_until_ready(out_l)
    assert out_l.shape == (batch, 1), out_l.shape
    assert jnp.allclose(out_l, ref, atol=1e-4, rtol=1e-4), (
        float(jnp.max(jnp.abs(out_l - ref))))

    print("KERNEL_OK")
</pallas_src>

<mosaic_0001>
module attributes {stable_mosaic.version = 11 : i64} {
  func.func @matvec_kernel(%arg0: i32, %arg1: memref<16x32xf32, #tpu.memory_space<vmem>>, %arg2: memref<32x1xf32, #tpu.memory_space<vmem>>, %arg3: memref<1x1xf32, #tpu.memory_space<vmem>>, %arg4: memref<16x1xf32, #tpu.memory_space<vmem>>) attributes {dimension_semantics = [#tpu.dimension_semantics<parallel>], iteration_bounds = array<i64: 1>, scalar_prefetch = 0 : i64, scratch_operands = 0 : i64, tpu.core_type = #tpu.core_type<tc>, window_params = [{transform_indices = @transform_0, window_bounds = array<i64: 16, 32>}, {pipeline_mode = #tpu.pipeline_mode<synchronous>, transform_indices = @transform_1, window_bounds = array<i64: 32, 1>}, {pipeline_mode = #tpu.pipeline_mode<synchronous>, transform_indices = @transform_2, window_bounds = array<i64: 1, 1>}, {transform_indices = @transform_3, window_bounds = array<i64: 16, 1>}]} {
    %c0 = arith.constant 0 : index
    %c0_0 = arith.constant 0 : index
    %0 = vector.load %arg1[%c0, %c0_0] : memref<16x32xf32, #tpu.memory_space<vmem>>, vector<16x32xf32>
    %c0_1 = arith.constant 0 : index
    %c0_2 = arith.constant 0 : index
    %1 = vector.load %arg2[%c0_1, %c0_2] : memref<32x1xf32, #tpu.memory_space<vmem>>, vector<32x1xf32>
    %cst = arith.constant dense<0.000000e+00> : vector<16x1xf32>
    %2 = tpu.matmul %0, %1, %cst {dimension_numbers = #tpu.dot_dimension_numbers<[1], [0], [0], [1], [0, 0, 1, 1], [], []>} : vector<16x32xf32>, vector<32x1xf32>, vector<16x1xf32> -> vector<16x1xf32>
    %c0_3 = arith.constant 0 : index
    %c0_4 = arith.constant 0 : index
    %3 = vector.load %arg3[%c0_3, %c0_4] : memref<1x1xf32, #tpu.memory_space<vmem>>, vector<1x1xf32>
    %4 = vector.broadcast %3 : vector<1x1xf32> to vector<16x1xf32>
    %5 = arith.addf %2, %4 : vector<16x1xf32>
    %c0_5 = arith.constant 0 : index
    %c0_6 = arith.constant 0 : index
    %6 = vector.load %arg4[%c0_5, %c0_6] : memref<16x1xf32, #tpu.memory_space<vmem>>, vector<16x1xf32>
    tpu.vector_store %arg4[%c0_5, %c0_6], %5 {strides = array<i32>} : memref<16x1xf32, #tpu.memory_space<vmem>>, vector<16x1xf32>,
    return
  }
  func.func @transform_0(%arg0: i32) -> (i32, i32) {
    %c0_i32 = arith.constant 0 : i32
    %c0_i32_0 = arith.constant 0 : i32
    return %arg0, %c0_i32 : i32, i32
  }
  func.func @transform_1(%arg0: i32) -> (i32, i32) {
    %c0_i32 = arith.constant 0 : i32
    %c0_i32_0 = arith.constant 0 : i32
    %c0_i32_1 = arith.constant 0 : i32
    return %c0_i32, %c0_i32_0 : i32, i32
  }
  func.func @transform_2(%arg0: i32) -> (i32, i32) {
    %c0_i32 = arith.constant 0 : i32
    %c0_i32_0 = arith.constant 0 : i32
    %c0_i32_1 = arith.constant 0 : i32
    return %c0_i32, %c0_i32_0 : i32, i32
  }
  func.func @transform_3(%arg0: i32) -> (i32, i32) {
    %c0_i32 = arith.constant 0 : i32
    %c0_i32_0 = arith.constant 0 : i32
    return %arg0, %c0_i32 : i32, i32
  }
}

</mosaic_0001>

<llo_original>
// kernel: tpu_custom_call.1
$region0: #{tpu_custom_call.1}
  #allocation0 [shape = 'u32[]', space=smem, size = 0x4, offset = 0x4, fixed_abs, tag = 'smem constant byte address 0x4 - core index']
  #allocation1 [shape = 'u32[72,128]{1,0:T(1,128)}', space=vmem, size = 0x9000, scoped, tag = 'internal scratch']
  #allocation2 [shape = 'f32[1,1]{1,0:T(1,128)S(1)}', space=vmem, size = 0x200, scoped, tag = 'scoped memory for tpu_custom_call.1']
  %s0 = inlined_call_operand.vmem [shape: f32[16,32], index: 0, kind: input, shape index: {}]
  %s1 = inlined_call_operand.vmem [shape: f32[32,1], index: 1, kind: input, shape index: {}]
  %s2 = inlined_call_operand.<no memory space> [shape: f32[1,1], index: 2, kind: input, shape index: {}]
  %s3 = inlined_call_operand.vmem [shape: f32[16,1], index: 3, kind: output, shape index: {}]
  %s4 = sld [smem:[#allocation0]]
  $region22: #{tpu_custom_call.1} parent=0
    _
  %s6 = ssub.s32 1, %s4
  %s7 = scalar_select 0, %s6, %s4
  %v8 = vstv %s2
  %9 = vst [vmem:[#allocation2] sm:$0x1] %v8
  // Predicated region
  $region2: #{tpu_custom_call.1} parent=0 // pred_check
    _
  $region3: #{tpu_custom_call.1} parent=0 // pred_check_branch
    %11 = sbr.rel (0) target = $region5
  $region4: #{tpu_custom_call.1} parent=0 // pred_region
    _
  $region5: #{tpu_custom_call.1} parent=0 // pred_fallthru
    _
  // Predicated region
  $region6: #{tpu_custom_call.1} parent=0 // pred_check
    _
  $region7: #{tpu_custom_call.1} parent=0 // pred_check_branch
    %13 = sbr.rel (0) target = $region9
  $region8: #{tpu_custom_call.1} parent=0 // pred_region
    _
  $region9: #{tpu_custom_call.1} parent=0 // pred_fallthru
    _
  // Predicated region
  $region10: #{tpu_custom_call.1} parent=0 // pred_check
    _
  $region11: #{tpu_custom_call.1} parent=0 // pred_check_branch
    %15 = sbr.rel (0) target = $region13
  $region12: #{tpu_custom_call.1} parent=0 // pred_region
    _
  $region13: #{tpu_custom_call.1} parent=0 // pred_fallthru
    _
  %v16 = vld [vmem:[%s0] sm:$0xff]
  %v17 = vld [vmem:[%s0 + $0x8] sm:$0xff]
  %v18 = vld [vmem:[%s1] sm:$0xff]
  %v19 = vld [vmem:[%s1 + $0x8] sm:$0xff]
  %v20 = vld [vmem:[%s1 + $0x10] sm:$0xff]
  %v21 = vld [vmem:[%s1 + $0x18] sm:$0xff]
  %v22 = vld [vmem:[#allocation2] sm:$0x1]
  %v24 = vperm.slane %v22, 0
  %vm26 = vcmask 261120
  %v28 = vsel %vm26, %v16, 0
  %v31 = vsel %vm26, %v17, 0
  %33 = vmatpush.msra.mxu0 0.0
  %34 = vmatpush.msra.mxu0 0.0
  %35 = vmatpush.msra.mxu0 0.0
  %36 = vmatpush.msra.mxu0 0.0
  %37 = vmatpush.msra.mxu0 0.0
  %38 = vmatpush.msra.mxu0 0.0
  %39 = vmatpush.msra.mxu0 0.0
  %40 = vmatpush.msra.mxu0 0.0
  %41 = vmatpush.msra.mxu0 0.0
  %42 = vmatpush.msra.mxu0 0.0
  %43 = vmatpush.msra.mxu0 0.0
  %44 = vmatpush.msra.mxu0 0.0
  %45 = vmatpush.msra.mxu0 %v21
  %46 = vmatpush.msra.mxu0 %v20
  %47 = vmatpush.msra.mxu0 %v19
  %48 = vmatpush.msra.mxu0 %v18
  %49 = vmatmul.f32.gmra.mxu0 %v28
  %v50 = vpop.f32.mrf.mxu0
  %v51 = vadd.f32 %v24, %v50
  %52 = vmatmul.f32.gmra.mxu0 %v31
  %v53 = vpop.f32.mrf.mxu0
  %v54 = vadd.f32 %v24, %v53
  %55 = vdwg.mxu0
  %vm56 = vcmask 7168
  %57 = vst.msk [vmem:[%s3] sm:$0xff] %vm56, %v51
  %58 = vst.msk [vmem:[%s3 + $0x8] sm:$0xff] %vm56, %v54
  // Predicated region
  $region14: #{tpu_custom_call.1} parent=0 // pred_check
    _
  $region15: #{tpu_custom_call.1} parent=0 // pred_check_branch
    %60 = sbr.rel (0) target = $region17
  $region16: #{tpu_custom_call.1} parent=0 // pred_region
    _
  $region17: #{tpu_custom_call.1} parent=0 // pred_fallthru
    _
  // Predicated region
  $region18: #{tpu_custom_call.1} parent=0 // pred_check
    _
  $region19: #{tpu_custom_call.1} parent=0 // pred_check_branch
    %62 = sbr.rel (0) target = $region21
  $region20: #{tpu_custom_call.1} parent=0 // pred_region
    _
  $region21: #{tpu_custom_call.1} parent=0 // pred_fallthru
    _

</llo_original>
